<compile_context>
chip_gen: v7x
topology: tpu7x:2x2x1
jax: 0.10.0
libtpu: 0.0.40
codegen_flags: <defaults>
</compile_context>

<pallas_src>
import functools

import jax
import jax.numpy as jnp
from jax.experimental import pallas as pl
from jax.experimental.pallas import tpu as pltpu

EPS = 1e-8  # asteroid.losses.sdr.EPS


def _fuse_stats_kernel(sig_ref, gt_ref,
                       sx_ref, sg_ref, sxx_ref, sgg_ref, sl1_ref, gram_ref,
                       *, t_tile, offset, t_end, need_mask, single_src):
    """Streaming moment/Gram accumulation over one (row_tile, t_tile) block."""
    tb = pl.program_id(1)

    @pl.when(tb == 0)
    def _init():
        sx_ref[...] = jnp.zeros_like(sx_ref)
        sg_ref[...] = jnp.zeros_like(sg_ref)
        sxx_ref[...] = jnp.zeros_like(sxx_ref)
        sgg_ref[...] = jnp.zeros_like(sgg_ref)
        sl1_ref[...] = jnp.zeros_like(sl1_ref)
        gram_ref[...] = jnp.zeros_like(gram_ref)

    x = sig_ref[...].astype(jnp.float32)
    g = gt_ref[...].astype(jnp.float32)

    if need_mask:
        # Mask out t < offset and the (possibly garbage) tail of a partial block.
        t_idx = tb * t_tile + jax.lax.broadcasted_iota(jnp.int32, x.shape, 1)
        valid = jnp.logical_and(t_idx >= offset, t_idx < t_end)
        x = jnp.where(valid, x, 0.0)
        g = jnp.where(valid, g, 0.0)

    # Per-row moments (VPU products + lane reductions; hidden under the DMA
    # of the next block — kernel is HBM-bandwidth bound).
    sx_ref[...] += jnp.sum(x, axis=1, keepdims=True)
    sg_ref[...] += jnp.sum(g, axis=1, keepdims=True)
    sxx_ref[...] += jnp.sum(x * x, axis=1, keepdims=True)
    sgg_ref[...] += jnp.sum(g * g, axis=1, keepdims=True)
    sl1_ref[...] += jnp.sum(jnp.abs(x - g), axis=1, keepdims=True)

    if single_src:
        # One source per batch item: only the diagonal pair dot is needed.
        gram_ref[...] += jnp.sum(x * g, axis=1, keepdims=True)
    else:
        # All (est_row, gt_row) dots within the row block via one MXU matmul
        # (x @ g^T, contracting the time axis); within-batch pairs are
        # extracted in the finalize.
        gram_ref[...] += jax.lax.dot_general(
            x, g, dimension_numbers=(((1,), (1,)), ((), ())),
            preferred_element_type=jnp.float32)


def _pick_time_tile(T, r_tile, in_itemsize, max_t_tile):
    """128-aligned time tile sized so double-buffered input windows fit VMEM."""
    # 2 inputs x 2 pipeline buffers; budget input windows at ~8 MiB so the
    # whole kernel (incl. f32 temporaries) stays well under 32 MiB scoped VMEM
    # on every TPU generation.  Bigger tiles -> fewer grid steps -> closer to
    # the HBM roofline (per-step overhead ~0.35 us).
    input_budget = 8 * 1024 * 1024
    per_t = 4 * r_tile * max(int(in_itemsize), 4)
    cap = max(128, min(int(max_t_tile), input_budget // per_t))
    if T <= cap:
        return T
    return max(128, (cap // 128) * 128)


def fuse_loss(signal, gt, *, offset, r=50, lookahead=0,
              max_t_tile=8192, max_row_tile=64):
    """Pallas implementation of FuseLoss.forward."""
    if signal.ndim == 2:
        signal = signal[:, None, :]            # unsqueeze(1), as in torch module
    assert signal.shape == gt.shape, (signal.shape, gt.shape)

    if lookahead != 0:
        # TODO(synk): lookahead != 0 shifts the time origin of signal vs. gt;
        # a shifted-load BlockSpec can't express that, so fall back to
        # wrapper-side slicing (one extra HBM copy) for this rare path.
        signal = signal[..., offset + lookahead:]
        gt = gt[..., offset:-lookahead]
        offset = 0

    B, C, T = signal.shape
    R = B * C
    sig2 = signal.reshape(R, T)                # free reshape of contiguous HBM
    gt2 = gt.reshape(R, T)

    # ---- row tiling: bb batch items per block.  bb must divide B (so batch
    #      boundaries align with block boundaries) and bb*C should be a
    #      multiple of 8 (sublane-dense).  Largest valid candidate wins;
    #      otherwise fall back to all rows (full-dim block is always legal). ----
    bb = B
    for cand in range(1, B + 1):
        if B % cand == 0 and (cand * C) % 8 == 0 and cand * C <= max_row_tile:
            bb = cand
    r_tile = bb * C
    n_rb = B // bb

    # ---- time tiling: full T if it fits the VMEM budget, else 128-aligned
    #      chunks so VMEM use is bounded independent of the audio length. ----
    in_itemsize = jnp.dtype(signal.dtype).itemsize
    t_tile = _pick_time_tile(T, r_tile, in_itemsize, max_t_tile)
    n_tb = pl.cdiv(T, t_tile)
    need_mask = (offset > 0) or (n_tb * t_tile != T)

    single_src = (C == 1)
    gram_cols = 1 if single_src else r_tile

    kernel = functools.partial(
        _fuse_stats_kernel, t_tile=t_tile, offset=offset, t_end=T,
        need_mask=need_mask, single_src=single_src)

    def _acc_spec(cols):
        # Same block across the time axis -> accumulator stays resident in
        # VMEM; written back to HBM once per row block.
        return pl.BlockSpec((r_tile, cols), lambda rb, tb: (rb, 0))

    in_spec = pl.BlockSpec((r_tile, t_tile), lambda rb, tb: (rb, tb))

    # Advisory cost hint for XLA's scheduler around the custom call.
    t_valid = T - offset
    cost = pl.CostEstimate(
        flops=int(2 * R * t_valid * (5 + gram_cols)),
        transcendentals=0,
        bytes_accessed=int(2 * R * T * in_itemsize + R * (5 + gram_cols) * 4),
    )

    sx, sg, sxx, sgg, sl1, gram = pl.pallas_call(
        kernel,
        out_shape=(
            jax.ShapeDtypeStruct((R, 1), jnp.float32),          # Sum x
            jax.ShapeDtypeStruct((R, 1), jnp.float32),          # Sum g
            jax.ShapeDtypeStruct((R, 1), jnp.float32),          # Sum x^2
            jax.ShapeDtypeStruct((R, 1), jnp.float32),          # Sum g^2
            jax.ShapeDtypeStruct((R, 1), jnp.float32),          # Sum |x - g|
            jax.ShapeDtypeStruct((R, gram_cols), jnp.float32),  # pair dots
        ),
        grid_spec=pltpu.PrefetchScalarGridSpec(
            num_scalar_prefetch=0,
            grid=(n_rb, n_tb),
            in_specs=[in_spec, in_spec],
            out_specs=(_acc_spec(1), _acc_spec(1), _acc_spec(1), _acc_spec(1),
                       _acc_spec(1), _acc_spec(gram_cols)),
        ),
        compiler_params=pltpu.CompilerParams(
            dimension_semantics=("parallel", "arbitrary"),
            vmem_limit_bytes=32 * 1024 * 1024),
        cost_estimate=cost,
    )(sig2, gt2)

    # ---- tiny O(B*C^2) finalize in plain JAX ----
    inv_t = 1.0 / float(t_valid)
    n_elem = float(R * t_valid)

    l1_mean = jnp.sum(sl1) / n_elem

    sx_bc = sx.reshape(B, C)
    sg_bc = sg.reshape(B, C)
    est_e = jnp.maximum(sxx.reshape(B, C) - sx_bc * sx_bc * inv_t, 0.0)  # ||x-mu||^2
    tgt_e = jnp.maximum(sgg.reshape(B, C) - sg_bc * sg_bc * inv_t, 0.0)  # ||g-mu||^2

    if single_src:
        pair_xg = gram.reshape(B, 1, 1)
    else:
        # gram rows = est rows (rb, be, ce); cols = gt rows of the same block
        # (bt, ct).  SI-SDR only pairs channels within a batch item -> take
        # the be == bt diagonal.
        g5 = gram.reshape(n_rb, bb, C, bb, C)
        pair_xg = jnp.einsum("rbcbd->rbcd", g5).reshape(B, C, C)

    # zero-mean pair dots: <x - mu_x, g - mu_g> = Sum xg - Sum x * Sum g / T
    d = pair_xg - sx_bc[:, :, None] * sg_bc[:, None, :] * inv_t

    t_energy = tgt_e[:, None, :] + EPS
    alpha = d / t_energy
    proj_e = alpha * alpha * tgt_e[:, None, :]                    # ||proj||^2
    noise_e = jnp.maximum(est_e[:, :, None] - 2.0 * alpha * d + proj_e, 0.0)
    ratio = proj_e / (noise_e + EPS)
    sisdr = 10.0 * jnp.log10(ratio + EPS)
    sdr_mean = jnp.mean(-sisdr)

    return l1_mean * float(r) + sdr_mean


def fuse_loss_ref(signal, gt, *, offset, r=50, lookahead=0):
    """Pure-JAX reference mirroring the torch module (for sanity checking)."""
    if signal.ndim == 2:
        signal = signal[:, None, :]
    if lookahead == 0:
        s = signal[..., offset:]
        g = gt[..., offset:]
    else:
        s = signal[..., offset + lookahead:]
        g = gt[..., offset:-lookahead]
    l1 = jnp.mean(jnp.abs(s - g))
    est = s - jnp.mean(s, axis=-1, keepdims=True)
    tgt = g - jnp.mean(g, axis=-1, keepdims=True)
    s_t = tgt[:, None, :, :]
    s_e = est[:, :, None, :]
    dot = jnp.sum(s_e * s_t, axis=-1, keepdims=True)
    en = jnp.sum(s_t ** 2, axis=-1, keepdims=True) + EPS
    proj = dot * s_t / en
    e = s_e - proj
    sdr = jnp.sum(proj ** 2, axis=-1) / (jnp.sum(e ** 2, axis=-1) + EPS)
    sisdr = 10.0 * jnp.log10(sdr + EPS)
    return l1 * r + jnp.mean(-sisdr)


if __name__ == "__main__":
    key = jax.random.PRNGKey(0)
    ks = jax.random.split(key, 6)

    # Case 1: 2-D signal (exercises unsqueeze), single source, full-T block.
    B, T = 2, 256
    gt1 = jax.random.normal(ks[0], (B, 1, T), dtype=jnp.float32)
    sig1 = gt1[:, 0, :] + 0.1 * jax.random.normal(ks[1], (B, T), dtype=jnp.float32)
    out1 = jax.block_until_ready(fuse_loss(sig1, gt1, offset=16, r=50))
    ref1 = fuse_loss_ref(sig1, gt1, offset=16, r=50)
    assert jnp.allclose(out1, ref1, rtol=2e-3, atol=2e-3), (out1, ref1)

    # Case 2: multi-source, forced time tiling + partial last block + offset mask.
    B2, C2, T2 = 2, 4, 300
    gt2 = jax.random.normal(ks[2], (B2, C2, T2), dtype=jnp.float32)
    sig2 = gt2 + 0.2 * jax.random.normal(ks[3], (B2, C2, T2), dtype=jnp.float32)
    out2 = jax.block_until_ready(fuse_loss(sig2, gt2, offset=7, r=50, max_t_tile=128))
    ref2 = fuse_loss_ref(sig2, gt2, offset=7, r=50)
    assert jnp.allclose(out2, ref2, rtol=2e-3, atol=2e-3), (out2, ref2)

    # Case 3: nonzero lookahead (wrapper-side slicing fallback path).
    B3, C3, T3 = 3, 2, 200
    gt3 = jax.random.normal(ks[4], (B3, C3, T3), dtype=jnp.float32)
    sig3 = gt3 + 0.3 * jax.random.normal(ks[5], (B3, C3, T3), dtype=jnp.float32)
    out3 = jax.block_until_ready(fuse_loss(sig3, gt3, offset=5, r=50, lookahead=3))
    ref3 = fuse_loss_ref(sig3, gt3, offset=5, r=50, lookahead=3)
    assert jnp.allclose(out3, ref3, rtol=2e-3, atol=2e-3), (out3, ref3)

    # Case 4: larger single-source case exercising the VMEM-budget time tiling.
    B4, C4, T4 = 8, 1, 20000
    gt4 = jax.random.normal(ks[2], (B4, C4, T4), dtype=jnp.float32)
    sig4 = gt4 + 0.1 * jax.random.normal(ks[3], (B4, C4, T4), dtype=jnp.float32)
    out4 = jax.block_until_ready(fuse_loss(sig4, gt4, offset=160, r=50, max_t_tile=4096))
    ref4 = fuse_loss_ref(sig4, gt4, offset=160, r=50)
    assert jnp.allclose(out4, ref4, rtol=2e-3, atol=2e-3), (out4, ref4)

    print("KERNEL_OK")
</pallas_src>

<mosaic_0001>
module attributes {stable_mosaic.version = 11 : i64} {
  func.func @_fuse_stats_kernel(%arg0: i32, %arg1: i32, %arg2: memref<2x256xf32, #tpu.memory_space<vmem>>, %arg3: memref<2x256xf32, #tpu.memory_space<vmem>>, %arg4: memref<2x1xf32, #tpu.memory_space<vmem>>, %arg5: memref<2x1xf32, #tpu.memory_space<vmem>>, %arg6: memref<2x1xf32, #tpu.memory_space<vmem>>, %arg7: memref<2x1xf32, #tpu.memory_space<vmem>>, %arg8: memref<2x1xf32, #tpu.memory_space<vmem>>, %arg9: memref<2x1xf32, #tpu.memory_space<vmem>>) attributes {dimension_semantics = [#tpu.dimension_semantics<parallel>, #tpu.dimension_semantics<arbitrary>], iteration_bounds = array<i64: 1, 1>, scalar_prefetch = 0 : i64, scratch_operands = 0 : i64, tpu.core_type = #tpu.core_type<tc>, window_params = [{transform_indices = @transform_0, window_bounds = array<i64: 2, 256>}, {transform_indices = @transform_1, window_bounds = array<i64: 2, 256>}, {transform_indices = @transform_2, window_bounds = array<i64: 2, 1>}, {transform_indices = @transform_3, window_bounds = array<i64: 2, 1>}, {transform_indices = @transform_4, window_bounds = array<i64: 2, 1>}, {transform_indices = @transform_5, window_bounds = array<i64: 2, 1>}, {transform_indices = @transform_6, window_bounds = array<i64: 2, 1>}, {transform_indices = @transform_7, window_bounds = array<i64: 2, 1>}]} {
    %c0_i32 = arith.constant 0 : i32
    %0 = arith.cmpi eq, %arg1, %c0_i32 : i32
    %1 = arith.extui %0 : i1 to i32
    %c0_i32_0 = arith.constant 0 : i32
    %2 = arith.cmpi ne, %1, %c0_i32_0 : i32
    scf.if %2 {
      %cst_36 = arith.constant 0.000000e+00 : f32
      %53 = vector.broadcast %cst_36 : f32 to vector<2x1xf32>
      %c0_37 = arith.constant 0 : index
      %c0_38 = arith.constant 0 : index
      %54 = vector.load %arg4[%c0_37, %c0_38] : memref<2x1xf32, #tpu.memory_space<vmem>>, vector<2x1xf32>
      tpu.vector_store %arg4[%c0_37, %c0_38], %53 {strides = array<i32>} : memref<2x1xf32, #tpu.memory_space<vmem>>, vector<2x1xf32>,
      %cst_39 = arith.constant 0.000000e+00 : f32
      %55 = vector.broadcast %cst_39 : f32 to vector<2x1xf32>
      %c0_40 = arith.constant 0 : index
      %c0_41 = arith.constant 0 : index
      %56 = vector.load %arg5[%c0_40, %c0_41] : memref<2x1xf32, #tpu.memory_space<vmem>>, vector<2x1xf32>
      tpu.vector_store %arg5[%c0_40, %c0_41], %55 {strides = array<i32>} : memref<2x1xf32, #tpu.memory_space<vmem>>, vector<2x1xf32>,
      %cst_42 = arith.constant 0.000000e+00 : f32
      %57 = vector.broadcast %cst_42 : f32 to vector<2x1xf32>
      %c0_43 = arith.constant 0 : index
      %c0_44 = arith.constant 0 : index
      %58 = vector.load %arg6[%c0_43, %c0_44] : memref<2x1xf32, #tpu.memory_space<vmem>>, vector<2x1xf32>
      tpu.vector_store %arg6[%c0_43, %c0_44], %57 {strides = array<i32>} : memref<2x1xf32, #tpu.memory_space<vmem>>, vector<2x1xf32>,
      %cst_45 = arith.constant 0.000000e+00 : f32
      %59 = vector.broadcast %cst_45 : f32 to vector<2x1xf32>
      %c0_46 = arith.constant 0 : index
      %c0_47 = arith.constant 0 : index
      %60 = vector.load %arg7[%c0_46, %c0_47] : memref<2x1xf32, #tpu.memory_space<vmem>>, vector<2x1xf32>
      tpu.vector_store %arg7[%c0_46, %c0_47], %59 {strides = array<i32>} : memref<2x1xf32, #tpu.memory_space<vmem>>, vector<2x1xf32>,
      %cst_48 = arith.constant 0.000000e+00 : f32
      %61 = vector.broadcast %cst_48 : f32 to vector<2x1xf32>
      %c0_49 = arith.constant 0 : index
      %c0_50 = arith.constant 0 : index
      %62 = vector.load %arg8[%c0_49, %c0_50] : memref<2x1xf32, #tpu.memory_space<vmem>>, vector<2x1xf32>
      tpu.vector_store %arg8[%c0_49, %c0_50], %61 {strides = array<i32>} : memref<2x1xf32, #tpu.memory_space<vmem>>, vector<2x1xf32>,
      %cst_51 = arith.constant 0.000000e+00 : f32
      %63 = vector.broadcast %cst_51 : f32 to vector<2x1xf32>
      %c0_52 = arith.constant 0 : index
      %c0_53 = arith.constant 0 : index
      %64 = vector.load %arg9[%c0_52, %c0_53] : memref<2x1xf32, #tpu.memory_space<vmem>>, vector<2x1xf32>
      tpu.vector_store %arg9[%c0_52, %c0_53], %63 {strides = array<i32>} : memref<2x1xf32, #tpu.memory_space<vmem>>, vector<2x1xf32>,
    } else {
    }
    %c0 = arith.constant 0 : index
    %c0_1 = arith.constant 0 : index
    %3 = vector.load %arg2[%c0, %c0_1] : memref<2x256xf32, #tpu.memory_space<vmem>>, vector<2x256xf32>
    %c0_2 = arith.constant 0 : index
    %c0_3 = arith.constant 0 : index
    %4 = vector.load %arg3[%c0_2, %c0_3] : memref<2x256xf32, #tpu.memory_space<vmem>>, vector<2x256xf32>
    %c256_i32 = arith.constant 256 : i32
    %5 = arith.muli %arg1, %c256_i32 : i32
    %6 = tpu.iota {dimensions = array<i32: 1>} : vector<2x256xi32>
    %7 = vector.broadcast %5 : i32 to vector<2x256xi32>
    %8 = arith.addi %7, %6 : vector<2x256xi32>
    %c16_i32 = arith.constant 16 : i32
    %9 = vector.broadcast %c16_i32 : i32 to vector<2x256xi32>
    %10 = arith.cmpi sge, %8, %9 : vector<2x256xi32>
    %c256_i32_4 = arith.constant 256 : i32
    %11 = vector.broadcast %c256_i32_4 : i32 to vector<2x256xi32>
    %12 = arith.cmpi slt, %8, %11 : vector<2x256xi32>
    %13 = arith.andi %10, %12 : vector<2x256xi1>
    %cst = arith.constant 0.000000e+00 : f32
    %14 = vector.broadcast %cst : f32 to vector<2x256xf32>
    %15 = arith.select %13, %3, %14 : vector<2x256xi1>, vector<2x256xf32>
    %cst_5 = arith.constant 0.000000e+00 : f32
    %16 = vector.broadcast %cst_5 : f32 to vector<2x256xf32>
    %17 = arith.select %13, %4, %16 : vector<2x256xi1>, vector<2x256xf32>
    %c0_6 = arith.constant 0 : index
    %c0_7 = arith.constant 0 : index
    %18 = vector.load %arg4[%c0_6, %c0_7] : memref<2x1xf32, #tpu.memory_space<vmem>>, vector<2x1xf32>
    %cst_8 = arith.constant dense<0.000000e+00> : vector<2xf32>
    %19 = vector.multi_reduction <add>, %15, %cst_8 [1] : vector<2x256xf32> to vector<2xf32>
    %20 = vector.shape_cast %19 : vector<2xf32> to vector<2x1xf32>
    %21 = arith.addf %18, %20 : vector<2x1xf32>
    %c0_9 = arith.constant 0 : index
    %c0_10 = arith.constant 0 : index
    %22 = vector.load %arg4[%c0_9, %c0_10] : memref<2x1xf32, #tpu.memory_space<vmem>>, vector<2x1xf32>
    tpu.vector_store %arg4[%c0_9, %c0_10], %21 {strides = array<i32>} : memref<2x1xf32, #tpu.memory_space<vmem>>, vector<2x1xf32>,
    %c0_11 = arith.constant 0 : index
    %c0_12 = arith.constant 0 : index
    %23 = vector.load %arg5[%c0_11, %c0_12] : memref<2x1xf32, #tpu.memory_space<vmem>>, vector<2x1xf32>
    %cst_13 = arith.constant dense<0.000000e+00> : vector<2xf32>
    %24 = vector.multi_reduction <add>, %17, %cst_13 [1] : vector<2x256xf32> to vector<2xf32>
    %25 = vector.shape_cast %24 : vector<2xf32> to vector<2x1xf32>
    %26 = arith.addf %23, %25 : vector<2x1xf32>
    %c0_14 = arith.constant 0 : index
    %c0_15 = arith.constant 0 : index
    %27 = vector.load %arg5[%c0_14, %c0_15] : memref<2x1xf32, #tpu.memory_space<vmem>>, vector<2x1xf32>
    tpu.vector_store %arg5[%c0_14, %c0_15], %26 {strides = array<i32>} : memref<2x1xf32, #tpu.memory_space<vmem>>, vector<2x1xf32>,
    %c0_16 = arith.constant 0 : index
    %c0_17 = arith.constant 0 : index
    %28 = vector.load %arg6[%c0_16, %c0_17] : memref<2x1xf32, #tpu.memory_space<vmem>>, vector<2x1xf32>
    %29 = arith.mulf %15, %15 : vector<2x256xf32>
    %cst_18 = arith.constant dense<0.000000e+00> : vector<2xf32>
    %30 = vector.multi_reduction <add>, %29, %cst_18 [1] : vector<2x256xf32> to vector<2xf32>
    %31 = vector.shape_cast %30 : vector<2xf32> to vector<2x1xf32>
    %32 = arith.addf %28, %31 : vector<2x1xf32>
    %c0_19 = arith.constant 0 : index
    %c0_20 = arith.constant 0 : index
    %33 = vector.load %arg6[%c0_19, %c0_20] : memref<2x1xf32, #tpu.memory_space<vmem>>, vector<2x1xf32>
    tpu.vector_store %arg6[%c0_19, %c0_20], %32 {strides = array<i32>} : memref<2x1xf32, #tpu.memory_space<vmem>>, vector<2x1xf32>,
    %c0_21 = arith.constant 0 : index
    %c0_22 = arith.constant 0 : index
    %34 = vector.load %arg7[%c0_21, %c0_22] : memref<2x1xf32, #tpu.memory_space<vmem>>, vector<2x1xf32>
    %35 = arith.mulf %17, %17 : vector<2x256xf32>
    %cst_23 = arith.constant dense<0.000000e+00> : vector<2xf32>
    %36 = vector.multi_reduction <add>, %35, %cst_23 [1] : vector<2x256xf32> to vector<2xf32>
    %37 = vector.shape_cast %36 : vector<2xf32> to vector<2x1xf32>
    %38 = arith.addf %34, %37 : vector<2x1xf32>
    %c0_24 = arith.constant 0 : index
    %c0_25 = arith.constant 0 : index
    %39 = vector.load %arg7[%c0_24, %c0_25] : memref<2x1xf32, #tpu.memory_space<vmem>>, vector<2x1xf32>
    tpu.vector_store %arg7[%c0_24, %c0_25], %38 {strides = array<i32>} : memref<2x1xf32, #tpu.memory_space<vmem>>, vector<2x1xf32>,
    %c0_26 = arith.constant 0 : index
    %c0_27 = arith.constant 0 : index
    %40 = vector.load %arg8[%c0_26, %c0_27] : memref<2x1xf32, #tpu.memory_space<vmem>>, vector<2x1xf32>
    %41 = arith.subf %15, %17 : vector<2x256xf32>
    %42 = math.absf %41 : vector<2x256xf32>
    %cst_28 = arith.constant dense<0.000000e+00> : vector<2xf32>
    %43 = vector.multi_reduction <add>, %42, %cst_28 [1] : vector<2x256xf32> to vector<2xf32>
    %44 = vector.shape_cast %43 : vector<2xf32> to vector<2x1xf32>
    %45 = arith.addf %40, %44 : vector<2x1xf32>
    %c0_29 = arith.constant 0 : index
    %c0_30 = arith.constant 0 : index
    %46 = vector.load %arg8[%c0_29, %c0_30] : memref<2x1xf32, #tpu.memory_space<vmem>>, vector<2x1xf32>
    tpu.vector_store %arg8[%c0_29, %c0_30], %45 {strides = array<i32>} : memref<2x1xf32, #tpu.memory_space<vmem>>, vector<2x1xf32>,
    %c0_31 = arith.constant 0 : index
    %c0_32 = arith.constant 0 : index
    %47 = vector.load %arg9[%c0_31, %c0_32] : memref<2x1xf32, #tpu.memory_space<vmem>>, vector<2x1xf32>
    %48 = arith.mulf %15, %17 : vector<2x256xf32>
    %cst_33 = arith.constant dense<0.000000e+00> : vector<2xf32>
    %49 = vector.multi_reduction <add>, %48, %cst_33 [1] : vector<2x256xf32> to vector<2xf32>
    %50 = vector.shape_cast %49 : vector<2xf32> to vector<2x1xf32>
    %51 = arith.addf %47, %50 : vector<2x1xf32>
    %c0_34 = arith.constant 0 : index
    %c0_35 = arith.constant 0 : index
    %52 = vector.load %arg9[%c0_34, %c0_35] : memref<2x1xf32, #tpu.memory_space<vmem>>, vector<2x1xf32>
    tpu.vector_store %arg9[%c0_34, %c0_35], %51 {strides = array<i32>} : memref<2x1xf32, #tpu.memory_space<vmem>>, vector<2x1xf32>,
    return
  }
  func.func @transform_0(%arg0: i32, %arg1: i32) -> (i32, i32) {
    %c0_i32 = arith.constant 0 : i32
    return %arg0, %arg1 : i32, i32
  }
  func.func @transform_1(%arg0: i32, %arg1: i32) -> (i32, i32) {
    %c0_i32 = arith.constant 0 : i32
    return %arg0, %arg1 : i32, i32
  }
  func.func @transform_2(%arg0: i32, %arg1: i32) -> (i32, i32) {
    %c0_i32 = arith.constant 0 : i32
    %c0_i32_0 = arith.constant 0 : i32
    return %arg0, %c0_i32 : i32, i32
  }
  func.func @transform_3(%arg0: i32, %arg1: i32) -> (i32, i32) {
    %c0_i32 = arith.constant 0 : i32
    %c0_i32_0 = arith.constant 0 : i32
    return %arg0, %c0_i32 : i32, i32
  }
  func.func @transform_4(%arg0: i32, %arg1: i32) -> (i32, i32) {
    %c0_i32 = arith.constant 0 : i32
    %c0_i32_0 = arith.constant 0 : i32
    return %arg0, %c0_i32 : i32, i32
  }
  func.func @transform_5(%arg0: i32, %arg1: i32) -> (i32, i32) {
    %c0_i32 = arith.constant 0 : i32
    %c0_i32_0 = arith.constant 0 : i32
    return %arg0, %c0_i32 : i32, i32
  }
  func.func @transform_6(%arg0: i32, %arg1: i32) -> (i32, i32) {
    %c0_i32 = arith.constant 0 : i32
    %c0_i32_0 = arith.constant 0 : i32
    return %arg0, %c0_i32 : i32, i32
  }
  func.func @transform_7(%arg0: i32, %arg1: i32) -> (i32, i32) {
    %c0_i32 = arith.constant 0 : i32
    %c0_i32_0 = arith.constant 0 : i32
    return %arg0, %c0_i32 : i32, i32
  }
}

</mosaic_0001>

<llo_original>
// kernel: tpu_custom_call.1
$region0: #{tpu_custom_call.1}
  #allocation0 [shape = 'u32[]', space=smem, size = 0x4, offset = 0x4, fixed_abs, tag = 'smem constant byte address 0x4 - core index']
  #allocation1 [shape = 'u32[144,128]{1,0:T(1,128)}', space=vmem, size = 0x12000, scoped, tag = 'internal scratch']
  %s0 = inlined_call_operand.hbm [shape: f32[2,256], index: 0, kind: input, shape index: {}]
  %s1 = inlined_call_operand.hbm [shape: f32[2,256], index: 1, kind: input, shape index: {}]
  %s2 = inlined_call_operand.vmem [shape: f32[2,1], index: 2, kind: output, shape index: {0}]
  %s3 = inlined_call_operand.vmem [shape: f32[2,1], index: 3, kind: output, shape index: {1}]
  %s4 = inlined_call_operand.vmem [shape: f32[2,1], index: 4, kind: output, shape index: {2}]
  %s5 = inlined_call_operand.vmem [shape: f32[2,1], index: 5, kind: output, shape index: {3}]
  %s6 = inlined_call_operand.vmem [shape: f32[2,1], index: 6, kind: output, shape index: {4}]
  %s7 = inlined_call_operand.vmem [shape: f32[2,1], index: 7, kind: output, shape index: {5}]
  %8 = xla_tuple %s2, %s3, %s4, %s5, %s6, %s7
  %s9 = sld [smem:[#allocation0]]
  $region70: #{tpu_custom_call.1} parent=0
    _
  %s11 = ssub.s32 1, %s9
  %s12 = scalar_select 0, %s11, %s9
  $region1: #{tpu_custom_call.1} parent=0
    #allocation2 [shape = 'u8[2048]{0}', space=vmem, size = 0x800, scoped, tag = 'input window, operand 0, single buffered']
    #allocation3 [shape = 's32[1]{0}', space=sflag, size = 0x4, scoped, tag = 'scoped memory for tpu_custom_call.1']
    #allocation4 [shape = 'u8[2048]{0}', space=vmem, size = 0x800, scoped, tag = 'input window, operand 1, single buffered']
    #allocation5 [shape = 's32[1]{0}', space=sflag, size = 0x4, scoped, tag = 'scoped memory for tpu_custom_call.1']
    %13 = vsyncpa [#allocation3], 0
    %14 = vsyncpa [#allocation5], 0
    // Predicated region
    $region2: #{tpu_custom_call.1} parent=1 // pred_check
      _
    $region3: #{tpu_custom_call.1} parent=1 // pred_check_branch
      %16 = sbr.rel (0) target = $region5
    $region4: #{tpu_custom_call.1} parent=1 // pred_region
      %s18 = ssub.s32 64, 64
      %19 = vsyncadd [#allocation3], %s18
      %s21 = sshll.u32 [#allocation2], 4
      %s22 = int_to_ptr.vmem [resolvable:$true] %s21
      %24 = dma.hbm_to_vmem [thread:$0]  %s0, 64, %s22, [#allocation3]
    $region5: #{tpu_custom_call.1} parent=1 // pred_fallthru
      _
    // Predicated region
    $region6: #{tpu_custom_call.1} parent=1 // pred_check
      _
    $region7: #{tpu_custom_call.1} parent=1 // pred_check_branch
      %26 = sbr.rel (0) target = $region9
    $region8: #{tpu_custom_call.1} parent=1 // pred_region
      %s28 = ssub.s32 64, 64
      %29 = vsyncadd [#allocation5], %s28
      %s31 = sshll.u32 [#allocation4], 4
      %s32 = int_to_ptr.vmem [resolvable:$true] %s31
      %34 = dma.hbm_to_vmem [thread:$0]  %s1, 64, %s32, [#allocation5]
    $region9: #{tpu_custom_call.1} parent=1 // pred_fallthru
      _
    // Predicated region
    $region10: #{tpu_custom_call.1} parent=1 // pred_check
      _
    $region11: #{tpu_custom_call.1} parent=1 // pred_check_branch
      %36 = sbr.rel (0) target = $region13
    $region12: #{tpu_custom_call.1} parent=1 // pred_region
      %37 = dma.done [#allocation3], 64
    $region13: #{tpu_custom_call.1} parent=1 // pred_fallthru
      _
    // Predicated region
    $region14: #{tpu_custom_call.1} parent=1 // pred_check
      _
    $region15: #{tpu_custom_call.1} parent=1 // pred_check_branch
      %39 = sbr.rel (0) target = $region17
    $region16: #{tpu_custom_call.1} parent=1 // pred_region
      %40 = dma.done [#allocation5], 64
    $region17: #{tpu_custom_call.1} parent=1 // pred_fallthru
      _
    %p41 = scmp.eq.s32.totalorder 0, 0
    // Predicated region
    $region18: #{tpu_custom_call.1} parent=1 // pred_check
      %p42 = pneg %p41
    $region19: #{tpu_custom_call.1} parent=1 // pred_check_branch
      %44 = sbr.rel (%p42) target = $region21
    $region20: #{tpu_custom_call.1} parent=1 // pred_region
      %vm45 = vcmask 1024
      %46 = vst.msk [vmem:[%s2] sm:$0x3] %vm45, 0.0
      %47 = vst.msk [vmem:[%s3] sm:$0x3] %vm45, 0.0
      %48 = vst.msk [vmem:[%s4] sm:$0x3] %vm45, 0.0
      %49 = vst.msk [vmem:[%s5] sm:$0x3] %vm45, 0.0
      %50 = vst.msk [vmem:[%s6] sm:$0x3] %vm45, 0.0
      %51 = vst.msk [vmem:[%s7] sm:$0x3] %vm45, 0.0
    $region21: #{tpu_custom_call.1} parent=1 // pred_fallthru
      _
    %v52 = vld [vmem:[#allocation2] sm:$0xf]
    %v53 = vld [vmem:[#allocation4] sm:$0xf]
    %s54 = smul.u32 0, 256
    %v55 = vlaneseq
    %v56 = vand.u32 %v55, 127
    %v57 = vadd.s32 %v56, 128
    %v58 = vstv %s54
    %v59 = vadd.s32 %v58, %v56
    %v60 = vadd.s32 %v58, %v57
    %vm61 = vcmp.ge.s32.totalorder %v59, 16
    %vm62 = vcmp.ge.s32.totalorder %v60, 16
    %vm63 = vcmp.lt.s32.totalorder %v59, 256
    %vm64 = vcmp.lt.s32.totalorder %v60, 256
    %vm65 = vmand %vm61, %vm63
    %vm66 = vmand %vm62, %vm64
    %v69 = vunpack.c.l.s4 1983009808
    %v70 = vunpack.c.0.s8 %v69
    %v71 = vlaneseq
    %v72 = vshrl.u32 %v71, 7
    %v73 = vsub.s32 %v70, %v72
    %v74 = vrot.slane %v52, %v73
    %v75 = vcombine.high %v74, %v74
    %v78 = vsel %vm65, %v74, 0.0
    %v79 = vsel %vm66, %v75, 0.0
    %v82 = vunpack.c.l.s4 1983009808
    %v83 = vunpack.c.0.s8 %v82
    %v84 = vlaneseq
    %v85 = vshrl.u32 %v84, 7
    %v86 = vsub.s32 %v83, %v85
    %v87 = vrot.slane %v53, %v86
    %v88 = vcombine.high %v87, %v87
    %v91 = vsel %vm65, %v87, 0.0
    %v92 = vsel %vm66, %v88, 0.0
    %v93 = vld [vmem:[%s2] sm:$0x3]
    %vm94 = vcmask 1041408
    %v95 = vsel %vm94, %v78, 0.0
    %v96 = vsel %vm94, %v79, 0.0
    %v97 = vadd.f32 %v95, %v96
    %98 = vadd.xlane.f32.xlu0 %v97
    %v99 = vpop.xlane.xlu0 %98
    %v100 = vadd.f32 %v93, %v99
    %vm101 = vcmask 1024
    %102 = vst.msk [vmem:[%s2] sm:$0x3] %vm101, %v100
    %v103 = vld [vmem:[%s3] sm:$0x3]
    %v104 = vsel %vm94, %v91, 0.0
    %v105 = vsel %vm94, %v92, 0.0
    %v106 = vadd.f32 %v104, %v105
    %107 = vadd.xlane.f32.xlu0 %v106
    %v108 = vpop.xlane.xlu0 %107
    %v109 = vadd.f32 %v103, %v108
    %110 = vst.msk [vmem:[%s3] sm:$0x3] %vm101, %v109
    %v111 = vld [vmem:[%s4] sm:$0x3]
    %v112 = vmul.f32 %v78, %v78
    %v113 = vmul.f32 %v79, %v79
    %v114 = vsel %vm94, %v112, 0.0
    %v115 = vsel %vm94, %v113, 0.0
    %v116 = vadd.f32 %v114, %v115
    %117 = vadd.xlane.f32.xlu0 %v116
    %v118 = vpop.xlane.xlu0 %117
    %v119 = vadd.f32 %v111, %v118
    %120 = vst.msk [vmem:[%s4] sm:$0x3] %vm101, %v119
    %v121 = vld [vmem:[%s5] sm:$0x3]
    %v122 = vmul.f32 %v91, %v91
    %v123 = vmul.f32 %v92, %v92
    %v124 = vsel %vm94, %v122, 0.0
    %v125 = vsel %vm94, %v123, 0.0
    %v126 = vadd.f32 %v124, %v125
    %127 = vadd.xlane.f32.xlu0 %v126
    %v128 = vpop.xlane.xlu0 %127
    %v129 = vadd.f32 %v121, %v128
    %130 = vst.msk [vmem:[%s5] sm:$0x3] %vm101, %v129
    %v131 = vld [vmem:[%s6] sm:$0x3]
    %v132 = vsub.f32 %v78, %v91
    %v133 = vsub.f32 %v79, %v92
    %v134 = vand.u32 2147483647, %v132
    %v135 = vand.u32 2147483647, %v133
    %v136 = vsel %vm94, %v134, 0.0
    %v137 = vsel %vm94, %v135, 0.0
    %v138 = vadd.f32 %v136, %v137
    %139 = vadd.xlane.f32.xlu0 %v138
    %v140 = vpop.xlane.xlu0 %139
    %v141 = vadd.f32 %v131, %v140
    %142 = vst.msk [vmem:[%s6] sm:$0x3] %vm101, %v141
    %v143 = vld [vmem:[%s7] sm:$0x3]
    %v144 = vmul.f32 %v78, %v91
    %v145 = vmul.f32 %v79, %v92
    %v146 = vsel %vm94, %v144, 0.0
    %v147 = vsel %vm94, %v145, 0.0
    %v148 = vadd.f32 %v146, %v147
    %149 = vadd.xlane.f32.xlu0 %v148
    %v150 = vpop.xlane.xlu0 %149
    %v151 = vadd.f32 %v143, %v150
    %152 = vst.msk [vmem:[%s7] sm:$0x3] %vm101, %v151
    // Predicated region
    $region22: #{tpu_custom_call.1} parent=1 // pred_check
      _
    $region23: #{tpu_custom_call.1} parent=1 // pred_check_branch
      %154 = sbr.rel (0) target = $region25
    $region24: #{tpu_custom_call.1} parent=1 // pred_region
      _
    $region25: #{tpu_custom_call.1} parent=1 // pred_fallthru
      _
    // Predicated region
    $region26: #{tpu_custom_call.1} parent=1 // pred_check
      _
    $region27: #{tpu_custom_call.1} parent=1 // pred_check_branch
      %156 = sbr.rel (0) target = $region29
    $region28: #{tpu_custom_call.1} parent=1 // pred_region
      _
    $region29: #{tpu_custom_call.1} parent=1 // pred_fallthru
      _
    // Predicated region
    $region30: #{tpu_custom_call.1} parent=1 // pred_check
      _
    $region31: #{tpu_custom_call.1} parent=1 // pred_check_branch
      %158 = sbr.rel (0) target = $region33
    $region32: #{tpu_custom_call.1} parent=1 // pred_region
      _
    $region33: #{tpu_custom_call.1} parent=1 // pred_fallthru
      _
    // Predicated region
    $region34: #{tpu_custom_call.1} parent=1 // pred_check
      _
    $region35: #{tpu_custom_call.1} parent=1 // pred_check_branch
      %160 = sbr.rel (0) target = $region37
    $region36: #{tpu_custom_call.1} parent=1 // pred_region
      _
    $region37: #{tpu_custom_call.1} parent=1 // pred_fallthru
      _
    // Predicated region
    $region38: #{tpu_custom_call.1} parent=1 // pred_check
      _
    $region39: #{tpu_custom_call.1} parent=1 // pred_check_branch
      %162 = sbr.rel (0) target = $region41
    $region40: #{tpu_custom_call.1} parent=1 // pred_region
      _
    $region41: #{tpu_custom_call.1} parent=1 // pred_fallthru
      _
    // Predicated region
    $region42: #{tpu_custom_call.1} parent=1 // pred_check
      _
    $region43: #{tpu_custom_call.1} parent=1 // pred_check_branch
      %164 = sbr.rel (0) target = $region45
    $region44: #{tpu_custom_call.1} parent=1 // pred_region
      _
    $region45: #{tpu_custom_call.1} parent=1 // pred_fallthru
      _
    // Predicated region
    $region46: #{tpu_custom_call.1} parent=1 // pred_check
      _
    $region47: #{tpu_custom_call.1} parent=1 // pred_check_branch
      %166 = sbr.rel (0) target = $region49
    $region48: #{tpu_custom_call.1} parent=1 // pred_region
      _
    $region49: #{tpu_custom_call.1} parent=1 // pred_fallthru
      _
    // Predicated region
    $region50: #{tpu_custom_call.1} parent=1 // pred_check
      _
    $region51: #{tpu_custom_call.1} parent=1 // pred_check_branch
      %168 = sbr.rel (0) target = $region53
    $region52: #{tpu_custom_call.1} parent=1 // pred_region
      _
    $region53: #{tpu_custom_call.1} parent=1 // pred_fallthru
      _
    // Predicated region
    $region54: #{tpu_custom_call.1} parent=1 // pred_check
      _
    $region55: #{tpu_custom_call.1} parent=1 // pred_check_branch
      %170 = sbr.rel (0) target = $region57
    $region56: #{tpu_custom_call.1} parent=1 // pred_region
      _
    $region57: #{tpu_custom_call.1} parent=1 // pred_fallthru
      _
    // Predicated region
    $region58: #{tpu_custom_call.1} parent=1 // pred_check
      _
    $region59: #{tpu_custom_call.1} parent=1 // pred_check_branch
      %172 = sbr.rel (0) target = $region61
    $region60: #{tpu_custom_call.1} parent=1 // pred_region
      _
    $region61: #{tpu_custom_call.1} parent=1 // pred_fallthru
      _
    // Predicated region
    $region62: #{tpu_custom_call.1} parent=1 // pred_check
      _
    $region63: #{tpu_custom_call.1} parent=1 // pred_check_branch
      %174 = sbr.rel (0) target = $region65
    $region64: #{tpu_custom_call.1} parent=1 // pred_region
      _
    $region65: #{tpu_custom_call.1} parent=1 // pred_fallthru
      _
    // Predicated region
    $region66: #{tpu_custom_call.1} parent=1 // pred_check
      _
    $region67: #{tpu_custom_call.1} parent=1 // pred_check_branch
      %176 = sbr.rel (0) target = $region69
    $region68: #{tpu_custom_call.1} parent=1 // pred_region
      _
    $region69: #{tpu_custom_call.1} parent=1 // pred_fallthru
      _
    %177 = vsyncpa [#allocation3], 1
    %178 = vsyncpa [#allocation5], 1

</llo_original>
